<compile_context>
chip_gen: v6e
topology: v6e:2x2x1
jax: 0.10.0
libtpu: 0.0.40
codegen_flags: <defaults>
</compile_context>

<pallas_src>
import jax
import jax.numpy as jnp
from jax.experimental import pallas as pl
from jax.experimental.pallas import tpu as pltpu


def _ffn_kernel(x_ref, w1_ref, b1_ref, w2_ref, b2_ref, gamma_ref, beta_ref, o_ref):
    # x_ref: (TR, d_model) row tile; weights/biases/gamma/beta are full (constant index_map,
    # so Pallas DMAs them once and keeps them resident across the row grid).
    x = x_ref[...].astype(jnp.float32)

    # fc_1 + ReLU (MXU). HIGHEST precision keeps f32 parity with the PyTorch reference.
    h = jnp.dot(x, w1_ref[...].astype(jnp.float32),
                preferred_element_type=jnp.float32,
                precision=jax.lax.Precision.HIGHEST)
    h = jnp.maximum(h + b1_ref[...].astype(jnp.float32), 0.0)

    # fc_2 (MXU)
    y = jnp.dot(h, w2_ref[...].astype(jnp.float32),
                preferred_element_type=jnp.float32,
                precision=jax.lax.Precision.HIGHEST)
    y = y + b2_ref[...].astype(jnp.float32)

    # TODO(synk): nn.Dropout is identity here (inference); training-mode dropout would
    # need pltpu.prng_seed + pltpu.stateful_bernoulli with the module's p.

    # Residual + LayerNorm over last dim.  torch.std default: unbiased (ddof=1),
    # and eps (1e-6) is added to std (NOT inside the sqrt), matching the module.
    r = y + x
    d = r.shape[-1]
    mean = jnp.mean(r, axis=-1, keepdims=True)
    cent = r - mean
    var = jnp.sum(cent * cent, axis=-1, keepdims=True) * (1.0 / (d - 1))
    # sqrt + reciprocal both go to the EUP slot; avoids a VPU divide.
    inv = pl.reciprocal(jnp.sqrt(var) + 1e-6, approx=False)
    out = gamma_ref[...].astype(jnp.float32) * (cent * inv) + beta_ref[...].astype(jnp.float32)
    o_ref[...] = out.astype(o_ref.dtype)


def _round_up(n, m):
    return ((n + m - 1) // m) * m


def _choose_tile_rows(rows, d_model, d_ff, budget_bytes=20 * 1024 * 1024):
    """Largest row tile whose f32 working set (double-buffered in/out tiles plus the
    (TR, d_ff) hidden intermediate) stays well inside scoped VMEM on v5e/v6e/v7x."""
    per_row = 4 * (4 * d_model + 2 * d_ff)          # bytes per row across live buffers
    tr = max(8, budget_bytes // max(per_row, 1))
    tr = min(tr, 1024)
    tr = (tr // 8) * 8                               # sublane multiple
    # Never use a tile bigger than the (sublane-rounded) row count.
    return max(8, min(tr, _round_up(rows, 8)))


def feed_forward(x, w1, b1, w2, b2, gamma, beta, *, tile_rows=None):
    """FeedForward.forward(x) for x of shape (..., d_model).

    w1: (d_model, d_ff), b1: (d_ff,), w2: (d_ff, d_model), b2: (d_model,)
    gamma/beta: (d_model,)   (PyTorch Linear weights transposed to (in, out) layout)

    Note: weights are held fully resident in VMEM; for very large d_model*d_ff a
    K-tiled variant would be needed.  # TODO(synk): K-tile weights for huge models.
    Note: for d_model < 128 (as in the demo) lane occupancy is < 100%; typical
    transformer widths (>=512) are lane-dense.
    """
    orig_shape = x.shape
    d_model = orig_shape[-1]
    d_ff = w1.shape[-1]
    x2 = x.reshape(-1, d_model)          # no padding copy: ragged last tile handled by Pallas
    rows = x2.shape[0]

    if tile_rows is None:
        tile_rows = _choose_tile_rows(rows, d_model, d_ff)

    grid = (pl.cdiv(rows, tile_rows),)

    b1_2 = b1.reshape(1, d_ff)
    b2_2 = b2.reshape(1, d_model)
    gamma2 = gamma.reshape(1, d_model)
    beta2 = beta.reshape(1, d_model)

    out = pl.pallas_call(
        _ffn_kernel,
        out_shape=jax.ShapeDtypeStruct((rows, d_model), x.dtype),
        grid_spec=pltpu.PrefetchScalarGridSpec(
            num_scalar_prefetch=0,
            grid=grid,
            in_specs=[
                pl.BlockSpec((tile_rows, d_model), lambda i: (i, 0)),   # x row tile
                pl.BlockSpec((d_model, d_ff), lambda i: (0, 0)),        # W1 (resident)
                pl.BlockSpec((1, d_ff), lambda i: (0, 0)),              # b1
                pl.BlockSpec((d_ff, d_model), lambda i: (0, 0)),        # W2 (resident)
                pl.BlockSpec((1, d_model), lambda i: (0, 0)),           # b2
                pl.BlockSpec((1, d_model), lambda i: (0, 0)),           # gamma
                pl.BlockSpec((1, d_model), lambda i: (0, 0)),           # beta
            ],
            out_specs=pl.BlockSpec((tile_rows, d_model), lambda i: (i, 0)),
        ),
        compiler_params=pltpu.CompilerParams(
            # Row axis is embarrassingly parallel -> sharded across v7x's 2 TCs.
            dimension_semantics=("parallel",),
            # Fits v7x's 64 MiB physical VMEM while allowing big row tiles on all gens.
            vmem_limit_bytes=48 * 1024 * 1024,
        ),
    )(x2, w1, b1_2, w2, b2_2, gamma2, beta2)

    return out.reshape(orig_shape)


def _reference(x, w1, b1, w2, b2, gamma, beta):
    x32 = x.astype(jnp.float32)
    h = jnp.maximum(
        jnp.dot(x32, w1, precision=jax.lax.Precision.HIGHEST) + b1, 0.0)
    y = jnp.dot(h, w2, precision=jax.lax.Precision.HIGHEST) + b2
    r = y + x32
    mean = jnp.mean(r, axis=-1, keepdims=True)
    std = jnp.std(r, axis=-1, keepdims=True, ddof=1)
    return (gamma * (r - mean) / (std + 1e-6) + beta).astype(x.dtype)


if __name__ == "__main__":
    key = jax.random.PRNGKey(0)
    batch, seq, d_model, d_ff = 2, 8, 32, 64
    k1, k2, k3, k4, k5 = jax.random.split(key, 5)

    x = jax.random.normal(k1, (batch, seq, d_model), dtype=jnp.float32)
    # Deterministic weights (PyTorch Linear stored transposed -> we use (in, out) layout).
    w1 = jax.random.normal(k2, (d_model, d_ff), dtype=jnp.float32) / jnp.sqrt(d_model)
    b1 = jax.random.normal(k3, (d_ff,), dtype=jnp.float32) * 0.01
    w2 = jax.random.normal(k4, (d_ff, d_model), dtype=jnp.float32) / jnp.sqrt(d_ff)
    b2 = jax.random.normal(k5, (d_model,), dtype=jnp.float32) * 0.01
    gamma = jnp.ones((d_model,), dtype=jnp.float32)
    beta = jnp.zeros((d_model,), dtype=jnp.float32)

    y = feed_forward(x, w1, b1, w2, b2, gamma, beta)
    y = jax.block_until_ready(y)

    y_ref = _reference(x, w1, b1, w2, b2, gamma, beta)
    assert y.shape == x.shape
    assert jnp.allclose(y, y_ref, atol=5e-3, rtol=5e-3), "mismatch vs reference"

    print("KERNEL_OK")
</pallas_src>

<mosaic_0001>
module attributes {stable_mosaic.version = 11 : i64} {
  func.func @_ffn_kernel(%arg0: i32, %arg1: memref<16x32xf32, #tpu.memory_space<vmem>>, %arg2: memref<32x64xf32, #tpu.memory_space<vmem>>, %arg3: memref<1x64xf32, #tpu.memory_space<vmem>>, %arg4: memref<64x32xf32, #tpu.memory_space<vmem>>, %arg5: memref<1x32xf32, #tpu.memory_space<vmem>>, %arg6: memref<1x32xf32, #tpu.memory_space<vmem>>, %arg7: memref<1x32xf32, #tpu.memory_space<vmem>>, %arg8: memref<16x32xf32, #tpu.memory_space<vmem>>) attributes {dimension_semantics = [#tpu.dimension_semantics<parallel>], iteration_bounds = array<i64: 1>, scalar_prefetch = 0 : i64, scratch_operands = 0 : i64, tpu.core_type = #tpu.core_type<tc>, window_params = [{transform_indices = @transform_0, window_bounds = array<i64: 16, 32>}, {pipeline_mode = #tpu.pipeline_mode<synchronous>, transform_indices = @transform_1, window_bounds = array<i64: 32, 64>}, {pipeline_mode = #tpu.pipeline_mode<synchronous>, transform_indices = @transform_2, window_bounds = array<i64: 1, 64>}, {pipeline_mode = #tpu.pipeline_mode<synchronous>, transform_indices = @transform_3, window_bounds = array<i64: 64, 32>}, {pipeline_mode = #tpu.pipeline_mode<synchronous>, transform_indices = @transform_4, window_bounds = array<i64: 1, 32>}, {pipeline_mode = #tpu.pipeline_mode<synchronous>, transform_indices = @transform_5, window_bounds = array<i64: 1, 32>}, {pipeline_mode = #tpu.pipeline_mode<synchronous>, transform_indices = @transform_6, window_bounds = array<i64: 1, 32>}, {transform_indices = @transform_7, window_bounds = array<i64: 16, 32>}]} {
    %c0 = arith.constant 0 : index
    %c0_0 = arith.constant 0 : index
    %0 = vector.load %arg1[%c0, %c0_0] : memref<16x32xf32, #tpu.memory_space<vmem>>, vector<16x32xf32>
    %c0_1 = arith.constant 0 : index
    %c0_2 = arith.constant 0 : index
    %1 = vector.load %arg2[%c0_1, %c0_2] : memref<32x64xf32, #tpu.memory_space<vmem>>, vector<32x64xf32>
    %cst = arith.constant dense<0.000000e+00> : vector<16x64xf32>
    %2 = tpu.matmul %0, %1, %cst {dimension_numbers = #tpu.dot_dimension_numbers<[1], [0], [0], [1], [0, 0, 1, 1], [], []>, precision = #tpu.contract_precision<fp32>} : vector<16x32xf32>, vector<32x64xf32>, vector<16x64xf32> -> vector<16x64xf32>
    %c0_3 = arith.constant 0 : index
    %c0_4 = arith.constant 0 : index
    %3 = vector.load %arg3[%c0_3, %c0_4] : memref<1x64xf32, #tpu.memory_space<vmem>>, vector<1x64xf32>
    %4 = vector.broadcast %3 : vector<1x64xf32> to vector<16x64xf32>
    %5 = arith.addf %2, %4 : vector<16x64xf32>
    %cst_5 = arith.constant 0.000000e+00 : f32
    %6 = vector.broadcast %cst_5 : f32 to vector<16x64xf32>
    %7 = arith.maximumf %5, %6 : vector<16x64xf32>
    %c0_6 = arith.constant 0 : index
    %c0_7 = arith.constant 0 : index
    %8 = vector.load %arg4[%c0_6, %c0_7] : memref<64x32xf32, #tpu.memory_space<vmem>>, vector<64x32xf32>
    %cst_8 = arith.constant dense<0.000000e+00> : vector<16x32xf32>
    %9 = tpu.matmul %7, %8, %cst_8 {dimension_numbers = #tpu.dot_dimension_numbers<[1], [0], [0], [1], [0, 0, 1, 1], [], []>, precision = #tpu.contract_precision<fp32>} : vector<16x64xf32>, vector<64x32xf32>, vector<16x32xf32> -> vector<16x32xf32>
    %c0_9 = arith.constant 0 : index
    %c0_10 = arith.constant 0 : index
    %10 = vector.load %arg5[%c0_9, %c0_10] : memref<1x32xf32, #tpu.memory_space<vmem>>, vector<1x32xf32>
    %11 = vector.broadcast %10 : vector<1x32xf32> to vector<16x32xf32>
    %12 = arith.addf %9, %11 : vector<16x32xf32>
    %13 = arith.addf %12, %0 : vector<16x32xf32>
    %cst_11 = arith.constant dense<0.000000e+00> : vector<16xf32>
    %14 = vector.multi_reduction <add>, %13, %cst_11 [1] : vector<16x32xf32> to vector<16xf32>
    %15 = vector.shape_cast %14 : vector<16xf32> to vector<16x1xf32>
    %cst_12 = arith.constant 3.200000e+01 : f32
    %16 = vector.broadcast %cst_12 : f32 to vector<16x1xf32>
    %17 = arith.divf %15, %16 : vector<16x1xf32>
    %18 = vector.broadcast %17 : vector<16x1xf32> to vector<16x32xf32>
    %19 = arith.subf %13, %18 : vector<16x32xf32>
    %20 = arith.mulf %19, %19 : vector<16x32xf32>
    %cst_13 = arith.constant dense<0.000000e+00> : vector<16xf32>
    %21 = vector.multi_reduction <add>, %20, %cst_13 [1] : vector<16x32xf32> to vector<16xf32>
    %22 = vector.shape_cast %21 : vector<16xf32> to vector<16x1xf32>
    %cst_14 = arith.constant 0.0322580636 : f32
    %23 = vector.broadcast %cst_14 : f32 to vector<16x1xf32>
    %24 = arith.mulf %22, %23 : vector<16x1xf32>
    %25 = math.sqrt %24 : vector<16x1xf32>
    %cst_15 = arith.constant 9.99999997E-7 : f32
    %26 = vector.broadcast %cst_15 : f32 to vector<16x1xf32>
    %27 = arith.addf %25, %26 : vector<16x1xf32>
    %28 = tpu.reciprocal %27 : vector<16x1xf32> -> vector<16x1xf32>
    %c0_16 = arith.constant 0 : index
    %c0_17 = arith.constant 0 : index
    %29 = vector.load %arg6[%c0_16, %c0_17] : memref<1x32xf32, #tpu.memory_space<vmem>>, vector<1x32xf32>
    %30 = vector.broadcast %28 : vector<16x1xf32> to vector<16x32xf32>
    %31 = arith.mulf %19, %30 : vector<16x32xf32>
    %32 = vector.broadcast %29 : vector<1x32xf32> to vector<16x32xf32>
    %33 = arith.mulf %32, %31 : vector<16x32xf32>
    %c0_18 = arith.constant 0 : index
    %c0_19 = arith.constant 0 : index
    %34 = vector.load %arg7[%c0_18, %c0_19] : memref<1x32xf32, #tpu.memory_space<vmem>>, vector<1x32xf32>
    %35 = vector.broadcast %34 : vector<1x32xf32> to vector<16x32xf32>
    %36 = arith.addf %33, %35 : vector<16x32xf32>
    %c0_20 = arith.constant 0 : index
    %c0_21 = arith.constant 0 : index
    %37 = vector.load %arg8[%c0_20, %c0_21] : memref<16x32xf32, #tpu.memory_space<vmem>>, vector<16x32xf32>
    tpu.vector_store %arg8[%c0_20, %c0_21], %36 {strides = array<i32>} : memref<16x32xf32, #tpu.memory_space<vmem>>, vector<16x32xf32>,
    return
  }
  func.func @transform_0(%arg0: i32) -> (i32, i32) {
    %c0_i32 = arith.constant 0 : i32
    %c0_i32_0 = arith.constant 0 : i32
    return %arg0, %c0_i32 : i32, i32
  }
  func.func @transform_1(%arg0: i32) -> (i32, i32) {
    %c0_i32 = arith.constant 0 : i32
    %c0_i32_0 = arith.constant 0 : i32
    %c0_i32_1 = arith.constant 0 : i32
    return %c0_i32, %c0_i32_0 : i32, i32
  }
  func.func @transform_2(%arg0: i32) -> (i32, i32) {
    %c0_i32 = arith.constant 0 : i32
    %c0_i32_0 = arith.constant 0 : i32
    %c0_i32_1 = arith.constant 0 : i32
    return %c0_i32, %c0_i32_0 : i32, i32
  }
  func.func @transform_3(%arg0: i32) -> (i32, i32) {
    %c0_i32 = arith.constant 0 : i32
    %c0_i32_0 = arith.constant 0 : i32
    %c0_i32_1 = arith.constant 0 : i32
    return %c0_i32, %c0_i32_0 : i32, i32
  }
  func.func @transform_4(%arg0: i32) -> (i32, i32) {
    %c0_i32 = arith.constant 0 : i32
    %c0_i32_0 = arith.constant 0 : i32
    %c0_i32_1 = arith.constant 0 : i32
    return %c0_i32, %c0_i32_0 : i32, i32
  }
  func.func @transform_5(%arg0: i32) -> (i32, i32) {
    %c0_i32 = arith.constant 0 : i32
    %c0_i32_0 = arith.constant 0 : i32
    %c0_i32_1 = arith.constant 0 : i32
    return %c0_i32, %c0_i32_0 : i32, i32
  }
  func.func @transform_6(%arg0: i32) -> (i32, i32) {
    %c0_i32 = arith.constant 0 : i32
    %c0_i32_0 = arith.constant 0 : i32
    %c0_i32_1 = arith.constant 0 : i32
    return %c0_i32, %c0_i32_0 : i32, i32
  }
  func.func @transform_7(%arg0: i32) -> (i32, i32) {
    %c0_i32 = arith.constant 0 : i32
    %c0_i32_0 = arith.constant 0 : i32
    return %arg0, %c0_i32 : i32, i32
  }
}

</mosaic_0001>

<llo_original>
// kernel: tpu_custom_call.1
$region0: #{tpu_custom_call.1}
  #allocation0 [shape = 'u32[]', space=smem, size = 0x4, offset = 0x4, fixed_abs, tag = 'smem constant byte address 0x4 - core index']
  #allocation1 [shape = 'u32[144,128]{1,0:T(1,128)}', space=vmem, size = 0x12000, scoped, tag = 'internal scratch']
  %s0 = inlined_call_operand.vmem [shape: f32[16,32], index: 0, kind: input, shape index: {}]
  %s1 = inlined_call_operand.vmem [shape: f32[32,64], index: 1, kind: input, shape index: {}]
  %s2 = inlined_call_operand.vmem [shape: f32[1,64], index: 2, kind: input, shape index: {}]
  %s3 = inlined_call_operand.vmem [shape: f32[64,32], index: 3, kind: input, shape index: {}]
  %s4 = inlined_call_operand.vmem [shape: f32[1,32], index: 4, kind: input, shape index: {}]
  %s5 = inlined_call_operand.vmem [shape: f32[1,32], index: 5, kind: input, shape index: {}]
  %s6 = inlined_call_operand.vmem [shape: f32[1,32], index: 6, kind: input, shape index: {}]
  %s7 = inlined_call_operand.hbm [shape: f32[16,32], index: 7, kind: output, shape index: {}]
  %s8 = sld [smem:[#allocation0]]
  $region38: #{tpu_custom_call.1} parent=0
    _
  %s10 = ssub.s32 1, %s8
  %s11 = scalar_select 0, %s10, %s8
  $region1: #{tpu_custom_call.1} parent=0
    #allocation2 [shape = 'u8[8192]{0}', space=vmem, size = 0x2000, scoped, tag = 'output window, operand 0, single buffered']
    #allocation3 [shape = 's32[1]{0}', space=sflag, size = 0x4, scoped, tag = 'scoped memory for tpu_custom_call.1']
    %12 = vsyncpa [#allocation3], 0
    // Predicated region
    $region2: #{tpu_custom_call.1} parent=1 // pred_check
      _
    $region3: #{tpu_custom_call.1} parent=1 // pred_check_branch
      %14 = sbr.rel (0) target = $region5
    $region4: #{tpu_custom_call.1} parent=1 // pred_region
      _
    $region5: #{tpu_custom_call.1} parent=1 // pred_fallthru
      _
    // Predicated region
    $region6: #{tpu_custom_call.1} parent=1 // pred_check
      _
    $region7: #{tpu_custom_call.1} parent=1 // pred_check_branch
      %16 = sbr.rel (0) target = $region9
    $region8: #{tpu_custom_call.1} parent=1 // pred_region
      _
    $region9: #{tpu_custom_call.1} parent=1 // pred_fallthru
      _
    // Predicated region
    $region10: #{tpu_custom_call.1} parent=1 // pred_check
      _
    $region11: #{tpu_custom_call.1} parent=1 // pred_check_branch
      %18 = sbr.rel (0) target = $region13
    $region12: #{tpu_custom_call.1} parent=1 // pred_region
      _
    $region13: #{tpu_custom_call.1} parent=1 // pred_fallthru
      _
    // Predicated region
    $region14: #{tpu_custom_call.1} parent=1 // pred_check
      _
    $region15: #{tpu_custom_call.1} parent=1 // pred_check_branch
      %20 = sbr.rel (0) target = $region17
    $region16: #{tpu_custom_call.1} parent=1 // pred_region
      _
    $region17: #{tpu_custom_call.1} parent=1 // pred_fallthru
      _
    // Predicated region
    $region18: #{tpu_custom_call.1} parent=1 // pred_check
      _
    $region19: #{tpu_custom_call.1} parent=1 // pred_check_branch
      %22 = sbr.rel (0) target = $region21
    $region20: #{tpu_custom_call.1} parent=1 // pred_region
      _
    $region21: #{tpu_custom_call.1} parent=1 // pred_fallthru
      _
    // Predicated region
    $region22: #{tpu_custom_call.1} parent=1 // pred_check
      _
    $region23: #{tpu_custom_call.1} parent=1 // pred_check_branch
      %24 = sbr.rel (0) target = $region25
    $region24: #{tpu_custom_call.1} parent=1 // pred_region
      _
    $region25: #{tpu_custom_call.1} parent=1 // pred_fallthru
      _
    // Predicated region
    $region26: #{tpu_custom_call.1} parent=1 // pred_check
      _
    $region27: #{tpu_custom_call.1} parent=1 // pred_check_branch
      %26 = sbr.rel (0) target = $region29
    $region28: #{tpu_custom_call.1} parent=1 // pred_region
      _
    $region29: #{tpu_custom_call.1} parent=1 // pred_fallthru
      _
    %v27 = vld [vmem:[%s0] sm:$0xff]
    %v28 = vld [vmem:[%s0 + $0x8] sm:$0xff]
    %v29 = vld [vmem:[%s1] sm:$0xff]
    %v30 = vld [vmem:[%s1 + $0x8] sm:$0xff]
    %v31 = vld [vmem:[%s1 + $0x10] sm:$0xff]
    %v32 = vld [vmem:[%s1 + $0x18] sm:$0xff]
    %v33 = vld [vmem:[%s2] sm:$0x1]
    %v35 = vlaneseq
    %v36 = vshrl.u32 %v35, 7
    %v37 = vsub.s32 0, %v36
    %v38 = vrot.slane %v33, %v37
    %vm40 = vcmask 261120
    %v42 = vsel %vm40, %v27, 0
    %v45 = vsel %vm40, %v28, 0
    %47 = vmatprep.subr.mxu0 0.0
    %48 = vmatpush1.msra.mxu0 0.0
    %49 = vmatprep.subr.mxu0 0.0
    %50 = vmatpush1.msra.mxu0 0.0
    %51 = vmatprep.subr.mxu0 0.0
    %52 = vmatpush1.msra.mxu0 0.0
    %53 = vmatprep.subr.mxu0 0.0
    %54 = vmatpush1.msra.mxu0 0.0
    %55 = vmatprep.subr.mxu0 0.0
    %56 = vmatpush1.msra.mxu0 0.0
    %57 = vmatprep.subr.mxu0 0.0
    %58 = vmatpush1.msra.mxu0 0.0
    %59 = vmatprep.subr.mxu0 0.0
    %60 = vmatpush1.msra.mxu0 0.0
    %61 = vmatprep.subr.mxu0 0.0
    %62 = vmatpush1.msra.mxu0 0.0
    %63 = vmatprep.subr.mxu0 0.0
    %64 = vmatpush1.msra.mxu0 0.0
    %65 = vmatprep.subr.mxu0 0.0
    %66 = vmatpush1.msra.mxu0 0.0
    %67 = vmatprep.subr.mxu0 0.0
    %68 = vmatpush1.msra.mxu0 0.0
    %69 = vmatprep.subr.mxu0 0.0
    %70 = vmatpush1.msra.mxu0 0.0
    %71 = vmatprep.subr.mxu0 0.0
    %v72 = vand.u32 %v32, 4294901760
    %73 = vmatpush1.msra.mxu0 %v72
    %74 = vmatprep.subr.mxu0 0.0
    %v75 = vand.u32 %v31, 4294901760
    %76 = vmatpush1.msra.mxu0 %v75
    %77 = vmatprep.subr.mxu0 0.0
    %v78 = vand.u32 %v30, 4294901760
    %79 = vmatpush1.msra.mxu0 %v78
    %80 = vmatprep.subr.mxu0 0.0
    %v81 = vand.u32 %v29, 4294901760
    %82 = vmatpush1.msra.mxu0 %v81
    %83 = vmatprep.subr.mxu0 0.0
    %84 = vmatpush2.msra.mxu0 0.0
    %85 = vmatprep.subr.mxu0 0.0
    %86 = vmatpush2.msra.mxu0 0.0
    %87 = vmatprep.subr.mxu0 0.0
    %88 = vmatpush2.msra.mxu0 0.0
    %89 = vmatprep.subr.mxu0 0.0
    %90 = vmatpush2.msra.mxu0 0.0
    %91 = vmatprep.subr.mxu0 0.0
    %92 = vmatpush2.msra.mxu0 0.0
    %93 = vmatprep.subr.mxu0 0.0
    %94 = vmatpush2.msra.mxu0 0.0
    %95 = vmatprep.subr.mxu0 0.0
    %96 = vmatpush2.msra.mxu0 0.0
    %97 = vmatprep.subr.mxu0 0.0
    %98 = vmatpush2.msra.mxu0 0.0
    %99 = vmatprep.subr.mxu0 0.0
    %100 = vmatpush2.msra.mxu0 0.0
    %101 = vmatprep.subr.mxu0 0.0
    %102 = vmatpush2.msra.mxu0 0.0
    %103 = vmatprep.subr.mxu0 0.0
    %104 = vmatpush2.msra.mxu0 0.0
    %105 = vmatprep.subr.mxu0 0.0
    %106 = vmatpush2.msra.mxu0 0.0
    %107 = vmatprep.subr.mxu0 0.0
    %108 = vmatpush2.msra.mxu0 0.0
    %109 = vmatprep.subr.mxu0 0.0
    %110 = vmatpush2.msra.mxu0 0.0
    %111 = vmatprep.subr.mxu0 0.0
    %112 = vmatpush2.msra.mxu0 0.0
    %113 = vmatprep.subr.mxu0 0.0
    %114 = vmatpush2.msra.mxu0 0.0
    %115 = vmatprep.mubr.f32.mxu0 0.0
    %v116 = vand.u32 %v42, 4294901760
    %v117 = vsub.f32 %v42, %v116
    %v118 = vand.u32 %v117, 4294901760
    %v119 = vsub.f32 %v117, %v118
    %v120 = vand.u32 %v119, 4294901760
    %121 = vmatmul.mubr.f32.gmra.mxu0 %v120
    %v122 = vpop.f32.mrf.mxu0
    %v123 = vadd.f32 %v38, %v122
    %v124 = vpop.f32.mrf.mxu0
    %125 = vmatprep.mubr.f32.mxu0 0.0
    %v126 = vand.u32 %v45, 4294901760
    %v127 = vsub.f32 %v45, %v126
    %v128 = vand.u32 %v127, 4294901760
    %v129 = vsub.f32 %v127, %v128
    %v130 = vand.u32 %v129, 4294901760
    %131 = vmatmul.mubr.f32.gmra.mxu0 %v130
    %v132 = vpop.f32.mrf.mxu0
    %v133 = vadd.f32 %v38, %v132
    %v134 = vpop.f32.mrf.mxu0
    %135 = vdwg.mxu0
    %136 = vmatprep.subr.mxu0 0.0
    %137 = vmatpush1.msra.mxu0 0.0
    %138 = vmatprep.subr.mxu0 0.0
    %139 = vmatpush1.msra.mxu0 0.0
    %140 = vmatprep.subr.mxu0 0.0
    %141 = vmatpush1.msra.mxu0 0.0
    %142 = vmatprep.subr.mxu0 0.0
    %143 = vmatpush1.msra.mxu0 0.0
    %144 = vmatprep.subr.mxu0 0.0
    %145 = vmatpush1.msra.mxu0 0.0
    %146 = vmatprep.subr.mxu0 0.0
    %147 = vmatpush1.msra.mxu0 0.0
    %148 = vmatprep.subr.mxu0 0.0
    %149 = vmatpush1.msra.mxu0 0.0
    %150 = vmatprep.subr.mxu0 0.0
    %151 = vmatpush1.msra.mxu0 0.0
    %152 = vmatprep.subr.mxu0 0.0
    %153 = vmatpush1.msra.mxu0 0.0
    %154 = vmatprep.subr.mxu0 0.0
    %155 = vmatpush1.msra.mxu0 0.0
    %156 = vmatprep.subr.mxu0 0.0
    %157 = vmatpush1.msra.mxu0 0.0
    %158 = vmatprep.subr.mxu0 0.0
    %159 = vmatpush1.msra.mxu0 0.0
    %160 = vmatprep.subr.mxu0 0.0
    %v161 = vand.u32 %v32, 4294901760
    %v162 = vsub.f32 %v32, %v161
    %v163 = vand.u32 %v162, 4294901760
    %v164 = vsub.f32 %v162, %v163
    %v165 = vand.u32 %v164, 4294901760
    %166 = vmatpush1.msra.mxu0 %v165
    %167 = vmatprep.subr.mxu0 0.0
    %v168 = vand.u32 %v31, 4294901760
    %v169 = vsub.f32 %v31, %v168
    %v170 = vand.u32 %v169, 4294901760
    %v171 = vsub.f32 %v169, %v170
    %v172 = vand.u32 %v171, 4294901760
    %173 = vmatpush1.msra.mxu0 %v172
    %174 = vmatprep.subr.mxu0 0.0
    %v175 = vand.u32 %v30, 4294901760
    %v176 = vsub.f32 %v30, %v175
    %v177 = vand.u32 %v176, 4294901760
    %v178 = vsub.f32 %v176, %v177
    %v179 = vand.u32 %v178, 4294901760
    %180 = vmatpush1.msra.mxu0 %v179
    %181 = vmatprep.subr.mxu0 0.0
    %v182 = vand.u32 %v29, 4294901760
    %v183 = vsub.f32 %v29, %v182
    %v184 = vand.u32 %v183, 4294901760
    %v185 = vsub.f32 %v183, %v184
    %v186 = vand.u32 %v185, 4294901760
    %187 = vmatpush1.msra.mxu0 %v186
    %188 = vmatprep.subr.mxu0 0.0
    %189 = vmatpush2.msra.mxu0 0.0
    %190 = vmatprep.subr.mxu0 0.0
    %191 = vmatpush2.msra.mxu0 0.0
    %192 = vmatprep.subr.mxu0 0.0
    %193 = vmatpush2.msra.mxu0 0.0
    %194 = vmatprep.subr.mxu0 0.0
    %195 = vmatpush2.msra.mxu0 0.0
    %196 = vmatprep.subr.mxu0 0.0
    %197 = vmatpush2.msra.mxu0 0.0
    %198 = vmatprep.subr.mxu0 0.0
    %199 = vmatpush2.msra.mxu0 0.0
    %200 = vmatprep.subr.mxu0 0.0
    %201 = vmatpush2.msra.mxu0 0.0
    %202 = vmatprep.subr.mxu0 0.0
    %203 = vmatpush2.msra.mxu0 0.0
    %204 = vmatprep.subr.mxu0 0.0
    %205 = vmatpush2.msra.mxu0 0.0
    %206 = vmatprep.subr.mxu0 0.0
    %207 = vmatpush2.msra.mxu0 0.0
    %208 = vmatprep.subr.mxu0 0.0
    %209 = vmatpush2.msra.mxu0 0.0
    %210 = vmatprep.subr.mxu0 0.0
    %211 = vmatpush2.msra.mxu0 0.0
    %212 = vmatprep.subr.mxu0 0.0
    %213 = vmatpush2.msra.mxu0 0.0
    %214 = vmatprep.subr.mxu0 0.0
    %215 = vmatpush2.msra.mxu0 0.0
    %216 = vmatprep.subr.mxu0 0.0
    %217 = vmatpush2.msra.mxu0 0.0
    %218 = vmatprep.subr.mxu0 0.0
    %219 = vmatpush2.msra.mxu0 0.0
    %220 = vmatprep.mubr.f32.mxu0 0.0
    %v221 = vand.u32 %v42, 4294901760
    %222 = vmatmul.mubr.f32.gmra.mxu0 %v221
    %v223 = vpop.f32.mrf.mxu0
    %v224 = vadd.f32 %v123, %v223
    %v225 = vpop.f32.mrf.mxu0
    %226 = vmatprep.mubr.f32.mxu0 0.0
    %v227 = vand.u32 %v45, 4294901760
    %228 = vmatmul.mubr.f32.gmra.mxu0 %v227
    %v229 = vpop.f32.mrf.mxu0
    %v230 = vadd.f32 %v133, %v229
    %v231 = vpop.f32.mrf.mxu0
    %232 = vdwg.mxu0
    %233 = vmatprep.subr.mxu0 0.0
    %234 = vmatpush1.msra.mxu0 0.0
    %235 = vmatprep.subr.mxu0 0.0
    %236 = vmatpush1.msra.mxu0 0.0
    %237 = vmatprep.subr.mxu0 0.0
    %238 = vmatpush1.msra.mxu0 0.0
    %239 = vmatprep.subr.mxu0 0.0
    %240 = vmatpush1.msra.mxu0 0.0
    %241 = vmatprep.subr.mxu0 0.0
    %242 = vmatpush1.msra.mxu0 0.0
    %243 = vmatprep.subr.mxu0 0.0
    %244 = vmatpush1.msra.mxu0 0.0
    %245 = vmatprep.subr.mxu0 0.0
    %246 = vmatpush1.msra.mxu0 0.0
    %247 = vmatprep.subr.mxu0 0.0
    %248 = vmatpush1.msra.mxu0 0.0
    %249 = vmatprep.subr.mxu0 0.0
    %250 = vmatpush1.msra.mxu0 0.0
    %251 = vmatprep.subr.mxu0 0.0
    %252 = vmatpush1.msra.mxu0 0.0
    %253 = vmatprep.subr.mxu0 0.0
    %254 = vmatpush1.msra.mxu0 0.0
    %255 = vmatprep.subr.mxu0 0.0
    %256 = vmatpush1.msra.mxu0 0.0
    %257 = vmatprep.subr.mxu0 0.0
    %v258 = vand.u32 %v32, 4294901760
    %v259 = vsub.f32 %v32, %v258
    %260 = vmatpush1.msra.mxu0 %v259
    %261 = vmatprep.subr.mxu0 0.0
    %v262 = vand.u32 %v31, 4294901760
    %v263 = vsub.f32 %v31, %v262
    %264 = vmatpush1.msra.mxu0 %v263
    %265 = vmatprep.subr.mxu0 0.0
    %v266 = vand.u32 %v30, 4294901760
    %v267 = vsub.f32 %v30, %v266
    %268 = vmatpush1.msra.mxu0 %v267
    %269 = vmatprep.subr.mxu0 0.0
    %v270 = vand.u32 %v29, 4294901760
    %v271 = vsub.f32 %v29, %v270
    %272 = vmatpush1.msra.mxu0 %v271
    %273 = vmatprep.subr.mxu0 0.0
    %274 = vmatpush2.msra.mxu0 0.0
    %275 = vmatprep.subr.mxu0 0.0
    %276 = vmatpush2.msra.mxu0 0.0
    %277 = vmatprep.subr.mxu0 0.0
    %278 = vmatpush2.msra.mxu0 0.0
    %279 = vmatprep.subr.mxu0 0.0
    %280 = vmatpush2.msra.mxu0 0.0
    %281 = vmatprep.subr.mxu0 0.0
    %282 = vmatpush2.msra.mxu0 0.0
    %283 = vmatprep.subr.mxu0 0.0
    %284 = vmatpush2.msra.mxu0 0.0
    %285 = vmatprep.subr.mxu0 0.0
    %286 = vmatpush2.msra.mxu0 0.0
    %287 = vmatprep.subr.mxu0 0.0
    %288 = vmatpush2.msra.mxu0 0.0
    %289 = vmatprep.subr.mxu0 0.0
    %290 = vmatpush2.msra.mxu0 0.0
    %291 = vmatprep.subr.mxu0 0.0
    %292 = vmatpush2.msra.mxu0 0.0
    %293 = vmatprep.subr.mxu0 0.0
    %294 = vmatpush2.msra.mxu0 0.0
    %295 = vmatprep.subr.mxu0 0.0
    %296 = vmatpush2.msra.mxu0 0.0
    %297 = vmatprep.subr.mxu0 0.0
    %298 = vmatpush2.msra.mxu0 0.0
    %299 = vmatprep.subr.mxu0 0.0
    %300 = vmatpush2.msra.mxu0 0.0
    %301 = vmatprep.subr.mxu0 0.0
    %302 = vmatpush2.msra.mxu0 0.0
    %303 = vmatprep.subr.mxu0 0.0
    %304 = vmatpush2.msra.mxu0 0.0
    %305 = vmatprep.mubr.f32.mxu0 0.0
    %v306 = vand.u32 %v42, 4294901760
    %v307 = vsub.f32 %v42, %v306
    %308 = vmatmul.mubr.f32.gmra.mxu0 %v307
    %v309 = vpop.f32.mrf.mxu0
    %v310 = vadd.f32 %v224, %v309
    %v311 = vpop.f32.mrf.mxu0
    %312 = vmatprep.mubr.f32.mxu0 0.0
    %v313 = vand.u32 %v45, 4294901760
    %v314 = vsub.f32 %v45, %v313
    %315 = vmatmul.mubr.f32.gmra.mxu0 %v314
    %v316 = vpop.f32.mrf.mxu0
    %v317 = vadd.f32 %v230, %v316
    %v318 = vpop.f32.mrf.mxu0
    %319 = vdwg.mxu0
    %320 = vmatprep.subr.mxu0 0.0
    %321 = vmatpush1.msra.mxu0 0.0
    %322 = vmatprep.subr.mxu0 0.0
    %323 = vmatpush1.msra.mxu0 0.0
    %324 = vmatprep.subr.mxu0 0.0
    %325 = vmatpush1.msra.mxu0 0.0
    %326 = vmatprep.subr.mxu0 0.0
    %327 = vmatpush1.msra.mxu0 0.0
    %328 = vmatprep.subr.mxu0 0.0
    %329 = vmatpush1.msra.mxu0 0.0
    %330 = vmatprep.subr.mxu0 0.0
    %331 = vmatpush1.msra.mxu0 0.0
    %332 = vmatprep.subr.mxu0 0.0
    %333 = vmatpush1.msra.mxu0 0.0
    %334 = vmatprep.subr.mxu0 0.0
    %335 = vmatpush1.msra.mxu0 0.0
    %336 = vmatprep.subr.mxu0 0.0
    %337 = vmatpush1.msra.mxu0 0.0
    %338 = vmatprep.subr.mxu0 0.0
    %339 = vmatpush1.msra.mxu0 0.0
    %340 = vmatprep.subr.mxu0 0.0
    %341 = vmatpush1.msra.mxu0 0.0
    %342 = vmatprep.subr.mxu0 0.0
    %343 = vmatpush1.msra.mxu0 0.0
    %344 = vmatprep.subr.mxu0 0.0
    %v345 = vand.u32 %v32, 4294901760
    %346 = vmatpush1.msra.mxu0 %v345
    %347 = vmatprep.subr.mxu0 0.0
    %v348 = vand.u32 %v31, 4294901760
    %349 = vmatpush1.msra.mxu0 %v348
    %350 = vmatprep.subr.mxu0 0.0
    %v351 = vand.u32 %v30, 4294901760
    %352 = vmatpush1.msra.mxu0 %v351
    %353 = vmatprep.subr.mxu0 0.0
    %v354 = vand.u32 %v29, 4294901760
    %355 = vmatpush1.msra.mxu0 %v354
    %356 = vmatprep.subr.mxu0 0.0
    %357 = vmatpush2.msra.mxu0 0.0
    %358 = vmatprep.subr.mxu0 0.0
    %359 = vmatpush2.msra.mxu0 0.0
    %360 = vmatprep.subr.mxu0 0.0
    %361 = vmatpush2.msra.mxu0 0.0
    %362 = vmatprep.subr.mxu0 0.0
    %363 = vmatpush2.msra.mxu0 0.0
    %364 = vmatprep.subr.mxu0 0.0
    %365 = vmatpush2.msra.mxu0 0.0
    %366 = vmatprep.subr.mxu0 0.0
    %367 = vmatpush2.msra.mxu0 0.0
    %368 = vmatprep.subr.mxu0 0.0
    %369 = vmatpush2.msra.mxu0 0.0
    %370 = vmatprep.subr.mxu0 0.0
    %371 = vmatpush2.msra.mxu0 0.0
    %372 = vmatprep.subr.mxu0 0.0
    %373 = vmatpush2.msra.mxu0 0.0
    %374 = vmatprep.subr.mxu0 0.0
    %375 = vmatpush2.msra.mxu0 0.0
    %376 = vmatprep.subr.mxu0 0.0
    %377 = vmatpush2.msra.mxu0 0.0
    %378 = vmatprep.subr.mxu0 0.0
    %379 = vmatpush2.msra.mxu0 0.0
    %380 = vmatprep.subr.mxu0 0.0
    %381 = vmatpush2.msra.mxu0 0.0
    %382 = vmatprep.subr.mxu0 0.0
    %383 = vmatpush2.msra.mxu0 0.0
    %384 = vmatprep.subr.mxu0 0.0
    %385 = vmatpush2.msra.mxu0 0.0
    %386 = vmatprep.subr.mxu0 0.0
    %387 = vmatpush2.msra.mxu0 0.0
    %388 = vmatprep.mubr.f32.mxu0 0.0
    %v389 = vand.u32 %v42, 4294901760
    %v390 = vsub.f32 %v42, %v389
    %v391 = vand.u32 %v390, 4294901760
    %392 = vmatmul.mubr.f32.gmra.mxu0 %v391
    %v393 = vpop.f32.mrf.mxu0
    %v394 = vadd.f32 %v310, %v393
    %v395 = vpop.f32.mrf.mxu0
    %396 = vmatprep.mubr.f32.mxu0 0.0
    %v397 = vand.u32 %v45, 4294901760
    %v398 = vsub.f32 %v45, %v397
    %v399 = vand.u32 %v398, 4294901760
    %400 = vmatmul.mubr.f32.gmra.mxu0 %v399
    %v401 = vpop.f32.mrf.mxu0
    %v402 = vadd.f32 %v317, %v401
    %v403 = vpop.f32.mrf.mxu0
    %404 = vdwg.mxu0
    %405 = vmatprep.subr.mxu0 0.0
    %406 = vmatpush1.msra.mxu0 0.0
    %407 = vmatprep.subr.mxu0 0.0
    %408 = vmatpush1.msra.mxu0 0.0
    %409 = vmatprep.subr.mxu0 0.0
    %410 = vmatpush1.msra.mxu0 0.0
    %411 = vmatprep.subr.mxu0 0.0
    %412 = vmatpush1.msra.mxu0 0.0
    %413 = vmatprep.subr.mxu0 0.0
    %414 = vmatpush1.msra.mxu0 0.0
    %415 = vmatprep.subr.mxu0 0.0
    %416 = vmatpush1.msra.mxu0 0.0
    %417 = vmatprep.subr.mxu0 0.0
    %418 = vmatpush1.msra.mxu0 0.0
    %419 = vmatprep.subr.mxu0 0.0
    %420 = vmatpush1.msra.mxu0 0.0
    %421 = vmatprep.subr.mxu0 0.0
    %422 = vmatpush1.msra.mxu0 0.0
    %423 = vmatprep.subr.mxu0 0.0
    %424 = vmatpush1.msra.mxu0 0.0
    %425 = vmatprep.subr.mxu0 0.0
    %426 = vmatpush1.msra.mxu0 0.0
    %427 = vmatprep.subr.mxu0 0.0
    %428 = vmatpush1.msra.mxu0 0.0
    %429 = vmatprep.subr.mxu0 0.0
    %v430 = vand.u32 %v32, 4294901760
    %v431 = vsub.f32 %v32, %v430
    %v432 = vand.u32 %v431, 4294901760
    %433 = vmatpush1.msra.mxu0 %v432
    %434 = vmatprep.subr.mxu0 0.0
    %v435 = vand.u32 %v31, 4294901760
    %v436 = vsub.f32 %v31, %v435
    %v437 = vand.u32 %v436, 4294901760
    %438 = vmatpush1.msra.mxu0 %v437
    %439 = vmatprep.subr.mxu0 0.0
    %v440 = vand.u32 %v30, 4294901760
    %v441 = vsub.f32 %v30, %v440
    %v442 = vand.u32 %v441, 4294901760
    %443 = vmatpush1.msra.mxu0 %v442
    %444 = vmatprep.subr.mxu0 0.0
    %v445 = vand.u32 %v29, 4294901760
    %v446 = vsub.f32 %v29, %v445
    %v447 = vand.u32 %v446, 4294901760
    %448 = vmatpush1.msra.mxu0 %v447
    %449 = vmatprep.subr.mxu0 0.0
    %450 = vmatpush2.msra.mxu0 0.0
    %451 = vmatprep.subr.mxu0 0.0
    %452 = vmatpush2.msra.mxu0 0.0
    %453 = vmatprep.subr.mxu0 0.0
    %454 = vmatpush2.msra.mxu0 0.0
    %455 = vmatprep.subr.mxu0 0.0
    %456 = vmatpush2.msra.mxu0 0.0
    %457 = vmatprep.subr.mxu0 0.0
    %458 = vmatpush2.msra.mxu0 0.0
    %459 = vmatprep.subr.mxu0 0.0
    %460 = vmatpush2.msra.mxu0 0.0
    %461 = vmatprep.subr.mxu0 0.0
    %462 = vmatpush2.msra.mxu0 0.0
    %463 = vmatprep.subr.mxu0 0.0
    %464 = vmatpush2.msra.mxu0 0.0
    %465 = vmatprep.subr.mxu0 0.0
    %466 = vmatpush2.msra.mxu0 0.0
    %467 = vmatprep.subr.mxu0 0.0
    %468 = vmatpush2.msra.mxu0 0.0
    %469 = vmatprep.subr.mxu0 0.0
    %470 = vmatpush2.msra.mxu0 0.0
    %471 = vmatprep.subr.mxu0 0.0
    %472 = vmatpush2.msra.mxu0 0.0
    %473 = vmatprep.subr.mxu0 0.0
    %474 = vmatpush2.msra.mxu0 0.0
    %475 = vmatprep.subr.mxu0 0.0
    %476 = vmatpush2.msra.mxu0 0.0
    %477 = vmatprep.subr.mxu0 0.0
    %478 = vmatpush2.msra.mxu0 0.0
    %479 = vmatprep.subr.mxu0 0.0
    %480 = vmatpush2.msra.mxu0 0.0
    %481 = vmatprep.mubr.f32.mxu0 0.0
    %v482 = vand.u32 %v42, 4294901760
    %483 = vmatmul.mubr.f32.gmra.mxu0 %v482
    %v484 = vpop.f32.mrf.mxu0
    %v485 = vadd.f32 %v394, %v484
    %v486 = vpop.f32.mrf.mxu0
    %487 = vmatprep.mubr.f32.mxu0 0.0
    %v488 = vand.u32 %v45, 4294901760
    %489 = vmatmul.mubr.f32.gmra.mxu0 %v488
    %v490 = vpop.f32.mrf.mxu0
    %v491 = vadd.f32 %v402, %v490
    %v492 = vpop.f32.mrf.mxu0
    %493 = vdwg.mxu0
    %494 = vmatprep.subr.mxu0 0.0
    %495 = vmatpush1.msra.mxu0 0.0
    %496 = vmatprep.subr.mxu0 0.0
    %497 = vmatpush1.msra.mxu0 0.0
    %498 = vmatprep.subr.mxu0 0.0
    %499 = vmatpush1.msra.mxu0 0.0
    %500 = vmatprep.subr.mxu0 0.0
    %501 = vmatpush1.msra.mxu0 0.0
    %502 = vmatprep.subr.mxu0 0.0
    %503 = vmatpush1.msra.mxu0 0.0
    %504 = vmatprep.subr.mxu0 0.0
    %505 = vmatpush1.msra.mxu0 0.0
    %506 = vmatprep.subr.mxu0 0.0
    %507 = vmatpush1.msra.mxu0 0.0
    %508 = vmatprep.subr.mxu0 0.0
    %509 = vmatpush1.msra.mxu0 0.0
    %510 = vmatprep.subr.mxu0 0.0
    %511 = vmatpush1.msra.mxu0 0.0
    %512 = vmatprep.subr.mxu0 0.0
    %513 = vmatpush1.msra.mxu0 0.0
    %514 = vmatprep.subr.mxu0 0.0
    %515 = vmatpush1.msra.mxu0 0.0
    %516 = vmatprep.subr.mxu0 0.0
    %517 = vmatpush1.msra.mxu0 0.0
    %518 = vmatprep.subr.mxu0 0.0
    %v519 = vand.u32 %v32, 4294901760
    %520 = vmatpush1.msra.mxu0 %v519
    %521 = vmatprep.subr.mxu0 0.0
    %v522 = vand.u32 %v31, 4294901760
    %523 = vmatpush1.msra.mxu0 %v522
    %524 = vmatprep.subr.mxu0 0.0
    %v525 = vand.u32 %v30, 4294901760
    %526 = vmatpush1.msra.mxu0 %v525
    %527 = vmatprep.subr.mxu0 0.0
    %v528 = vand.u32 %v29, 4294901760
    %529 = vmatpush1.msra.mxu0 %v528
    %530 = vmatprep.subr.mxu0 0.0
    %531 = vmatpush2.msra.mxu0 0.0
    %532 = vmatprep.subr.mxu0 0.0
    %533 = vmatpush2.msra.mxu0 0.0
    %534 = vmatprep.subr.mxu0 0.0
    %535 = vmatpush2.msra.mxu0 0.0
    %536 = vmatprep.subr.mxu0 0.0
    %537 = vmatpush2.msra.mxu0 0.0
    %538 = vmatprep.subr.mxu0 0.0
    %539 = vmatpush2.msra.mxu0 0.0
    %540 = vmatprep.subr.mxu0 0.0
    %541 = vmatpush2.msra.mxu0 0.0
    %542 = vmatprep.subr.mxu0 0.0
    %543 = vmatpush2.msra.mxu0 0.0
    %544 = vmatprep.subr.mxu0 0.0
    %545 = vmatpush2.msra.mxu0 0.0
    %546 = vmatprep.subr.mxu0 0.0
    %547 = vmatpush2.msra.mxu0 0.0
    %548 = vmatprep.subr.mxu0 0.0
    %549 = vmatpush2.msra.mxu0 0.0
    %550 = vmatprep.subr.mxu0 0.0
    %551 = vmatpush2.msra.mxu0 0.0
    %552 = vmatprep.subr.mxu0 0.0
    %553 = vmatpush2.msra.mxu0 0.0
    %554 = vmatprep.subr.mxu0 0.0
    %555 = vmatpush2.msra.mxu0 0.0
    %556 = vmatprep.subr.mxu0 0.0
    %557 = vmatpush2.msra.mxu0 0.0
    %558 = vmatprep.subr.mxu0 0.0
    %559 = vmatpush2.msra.mxu0 0.0
    %560 = vmatprep.subr.mxu0 0.0
    %561 = vmatpush2.msra.mxu0 0.0
    %562 = vmatprep.mubr.f32.mxu0 0.0
    %v563 = vand.u32 %v42, 4294901760
    %564 = vmatmul.mubr.f32.gmra.mxu0 %v563
    %v565 = vpop.f32.mrf.mxu0
    %v566 = vadd.f32 %v485, %v565
    %v567 = vpop.f32.mrf.mxu0
    %568 = vmatprep.mubr.f32.mxu0 0.0
    %v569 = vand.u32 %v45, 4294901760
    %570 = vmatmul.mubr.f32.gmra.mxu0 %v569
    %v571 = vpop.f32.mrf.mxu0
    %v572 = vadd.f32 %v491, %v571
    %v573 = vpop.f32.mrf.mxu0
    %574 = vdwg.mxu0
    %v575 = vmax.f32 %v566, 0.0
    %v576 = vmax.f32 %v572, 0.0
    %v577 = vld [vmem:[%s3] sm:$0xff]
    %v578 = vld [vmem:[%s3 + $0x8] sm:$0xff]
    %v579 = vld [vmem:[%s3 + $0x10] sm:$0xff]
    %v580 = vld [vmem:[%s3 + $0x18] sm:$0xff]
    %v581 = vld [vmem:[%s3 + $0x20] sm:$0xff]
    %v582 = vld [vmem:[%s3 + $0x28] sm:$0xff]
    %v583 = vld [vmem:[%s3 + $0x30] sm:$0xff]
    %v584 = vld [vmem:[%s3 + $0x38] sm:$0xff]
    %v585 = vld [vmem:[%s4] sm:$0x1]
    %v587 = vlaneseq
    %v588 = vshrl.u32 %v587, 7
    %v589 = vsub.s32 0, %v588
    %v590 = vrot.slane %v585, %v589
    %vm592 = vcmask 523264
    %v594 = vsel %vm592, %v575, 0
    %v597 = vsel %vm592, %v576, 0
    %599 = vmatprep.subr.mxu0 0.0
    %600 = vmatpush1.msra.mxu0 0.0
    %601 = vmatprep.subr.mxu0 0.0
    %602 = vmatpush1.msra.mxu0 0.0
    %603 = vmatprep.subr.mxu0 0.0
    %604 = vmatpush1.msra.mxu0 0.0
    %605 = vmatprep.subr.mxu0 0.0
    %606 = vmatpush1.msra.mxu0 0.0
    %607 = vmatprep.subr.mxu0 0.0
    %608 = vmatpush1.msra.mxu0 0.0
    %609 = vmatprep.subr.mxu0 0.0
    %610 = vmatpush1.msra.mxu0 0.0
    %611 = vmatprep.subr.mxu0 0.0
    %612 = vmatpush1.msra.mxu0 0.0
    %613 = vmatprep.subr.mxu0 0.0
    %614 = vmatpush1.msra.mxu0 0.0
    %615 = vmatprep.subr.mxu0 0.0
    %v616 = vand.u32 %v584, 4294901760
    %617 = vmatpush1.msra.mxu0 %v616
    %618 = vmatprep.subr.mxu0 0.0
    %v619 = vand.u32 %v583, 4294901760
    %620 = vmatpush1.msra.mxu0 %v619
    %621 = vmatprep.subr.mxu0 0.0
    %v622 = vand.u32 %v582, 4294901760
    %623 = vmatpush1.msra.mxu0 %v622
    %624 = vmatprep.subr.mxu0 0.0
    %v625 = vand.u32 %v581, 4294901760
    %626 = vmatpush1.msra.mxu0 %v625
    %627 = vmatprep.subr.mxu0 0.0
    %v628 = vand.u32 %v580, 4294901760
    %629 = vmatpush1.msra.mxu0 %v628
    %630 = vmatprep.subr.mxu0 0.0
    %v631 = vand.u32 %v579, 4294901760
    %632 = vmatpush1.msra.mxu0 %v631
    %633 = vmatprep.subr.mxu0 0.0
    %v634 = vand.u32 %v578, 4294901760
    %635 = vmatpush1.msra.mxu0 %v634
    %636 = vmatprep.subr.mxu0 0.0
    %v637 = vand.u32 %v577, 4294901760
    %638 = vmatpush1.msra.mxu0 %v637
    %639 = vmatprep.subr.mxu0 0.0
    %640 = vmatpush2.msra.mxu0 0.0
    %641 = vmatprep.subr.mxu0 0.0
    %642 = vmatpush2.msra.mxu0 0.0
    %643 = vmatprep.subr.mxu0 0.0
    %644 = vmatpush2.msra.mxu0 0.0
    %645 = vmatprep.subr.mxu0 0.0
    %646 = vmatpush2.msra.mxu0 0.0
    %647 = vmatprep.subr.mxu0 0.0
    %648 = vmatpush2.msra.mxu0 0.0
    %649 = vmatprep.subr.mxu0 0.0
    %650 = vmatpush2.msra.mxu0 0.0
    %651 = vmatprep.subr.mxu0 0.0
    %652 = vmatpush2.msra.mxu0 0.0
    %653 = vmatprep.subr.mxu0 0.0
    %654 = vmatpush2.msra.mxu0 0.0
    %655 = vmatprep.subr.mxu0 0.0
    %656 = vmatpush2.msra.mxu0 0.0
    %657 = vmatprep.subr.mxu0 0.0
    %658 = vmatpush2.msra.mxu0 0.0
    %659 = vmatprep.subr.mxu0 0.0
    %660 = vmatpush2.msra.mxu0 0.0
    %661 = vmatprep.subr.mxu0 0.0
    %662 = vmatpush2.msra.mxu0 0.0
    %663 = vmatprep.subr.mxu0 0.0
    %664 = vmatpush2.msra.mxu0 0.0
    %665 = vmatprep.subr.mxu0 0.0
    %666 = vmatpush2.msra.mxu0 0.0
    %667 = vmatprep.subr.mxu0 0.0
    %668 = vmatpush2.msra.mxu0 0.0
    %669 = vmatprep.subr.mxu0 0.0
    %670 = vmatpush2.msra.mxu0 0.0
    %671 = vmatprep.mubr.f32.mxu0 0.0
    %v672 = vand.u32 %v594, 4294901760
    %v673 = vsub.f32 %v594, %v672
    %v674 = vand.u32 %v673, 4294901760
    %v675 = vsub.f32 %v673, %v674
    %v676 = vand.u32 %v675, 4294901760
    %677 = vmatmul.mubr.f32.gmra.mxu0 %v676
    %v678 = vpop.f32.mrf.mxu0
    %v679 = vadd.f32 %v590, %v678
    %v680 = vpop.f32.mrf.mxu0
    %681 = vmatprep.mubr.f32.mxu0 0.0
    %v682 = vand.u32 %v597, 4294901760
    %v683 = vsub.f32 %v597, %v682
    %v684 = vand.u32 %v683, 4294901760
    %v685 = vsub.f32 %v683, %v684
    %v686 = vand.u32 %v685, 4294901760
    %687 = vmatmul.mubr.f32.gmra.mxu0 %v686
    %v688 = vpop.f32.mrf.mxu0
    %v689 = vadd.f32 %v590, %v688
    %v690 = vpop.f32.mrf.mxu0
    %691 = vdwg.mxu0
    %692 = vmatprep.subr.mxu0 0.0
    %693 = vmatpush1.msra.mxu0 0.0
    %694 = vmatprep.subr.mxu0 0.0
    %695 = vmatpush1.msra.mxu0 0.0
    %696 = vmatprep.subr.mxu0 0.0
    %697 = vmatpush1.msra.mxu0 0.0
    %698 = vmatprep.subr.mxu0 0.0
    %699 = vmatpush1.msra.mxu0 0.0
    %700 = vmatprep.subr.mxu0 0.0
    %701 = vmatpush1.msra.mxu0 0.0
    %702 = vmatprep.subr.mxu0 0.0
    %703 = vmatpush1.msra.mxu0 0.0
    %704 = vmatprep.subr.mxu0 0.0
    %705 = vmatpush1.msra.mxu0 0.0
    %706 = vmatprep.subr.mxu0 0.0
    %707 = vmatpush1.msra.mxu0 0.0
    %708 = vmatprep.subr.mxu0 0.0
    %v709 = vand.u32 %v584, 4294901760
    %v710 = vsub.f32 %v584, %v709
    %v711 = vand.u32 %v710, 4294901760
    %v712 = vsub.f32 %v710, %v711
    %v713 = vand.u32 %v712, 4294901760
    %714 = vmatpush1.msra.mxu0 %v713
    %715 = vmatprep.subr.mxu0 0.0
    %v716 = vand.u32 %v583, 4294901760
    %v717 = vsub.f32 %v583, %v716
    %v718 = vand.u32 %v717, 4294901760
    %v719 = vsub.f32 %v717, %v718
    %v720 = vand.u32 %v719, 4294901760
    %721 = vmatpush1.msra.mxu0 %v720
    %722 = vmatprep.subr.mxu0 0.0
    %v723 = vand.u32 %v582, 4294901760
    %v724 = vsub.f32 %v582, %v723
    %v725 = vand.u32 %v724, 4294901760
    %v726 = vsub.f32 %v724, %v725
    %v727 = vand.u32 %v726, 4294901760
    %728 = vmatpush1.msra.mxu0 %v727
    %729 = vmatprep.subr.mxu0 0.0
    %v730 = vand.u32 %v581, 4294901760
    %v731 = vsub.f32 %v581, %v730
    %v732 = vand.u32 %v731, 4294901760
    %v733 = vsub.f32 %v731, %v732
    %v734 = vand.u32 %v733, 4294901760
    %735 = vmatpush1.msra.mxu0 %v734
    %736 = vmatprep.subr.mxu0 0.0
    %v737 = vand.u32 %v580, 4294901760
    %v738 = vsub.f32 %v580, %v737
    %v739 = vand.u32 %v738, 4294901760
    %v740 = vsub.f32 %v738, %v739
    %v741 = vand.u32 %v740, 4294901760
    %742 = vmatpush1.msra.mxu0 %v741
    %743 = vmatprep.subr.mxu0 0.0
    %v744 = vand.u32 %v579, 4294901760
    %v745 = vsub.f32 %v579, %v744
    %v746 = vand.u32 %v745, 4294901760
    %v747 = vsub.f32 %v745, %v746
    %v748 = vand.u32 %v747, 4294901760
    %749 = vmatpush1.msra.mxu0 %v748
    %750 = vmatprep.subr.mxu0 0.0
    %v751 = vand.u32 %v578, 4294901760
    %v752 = vsub.f32 %v578, %v751
    %v753 = vand.u32 %v752, 4294901760
    %v754 = vsub.f32 %v752, %v753
    %v755 = vand.u32 %v754, 4294901760
    %756 = vmatpush1.msra.mxu0 %v755
    %757 = vmatprep.subr.mxu0 0.0
    %v758 = vand.u32 %v577, 4294901760
    %v759 = vsub.f32 %v577, %v758
    %v760 = vand.u32 %v759, 4294901760
    %v761 = vsub.f32 %v759, %v760
    %v762 = vand.u32 %v761, 4294901760
    %763 = vmatpush1.msra.mxu0 %v762
    %764 = vmatprep.subr.mxu0 0.0
    %765 = vmatpush2.msra.mxu0 0.0
    %766 = vmatprep.subr.mxu0 0.0
    %767 = vmatpush2.msra.mxu0 0.0
    %768 = vmatprep.subr.mxu0 0.0
    %769 = vmatpush2.msra.mxu0 0.0
    %770 = vmatprep.subr.mxu0 0.0
    %771 = vmatpush2.msra.mxu0 0.0
    %772 = vmatprep.subr.mxu0 0.0
    %773 = vmatpush2.msra.mxu0 0.0
    %774 = vmatprep.subr.mxu0 0.0
    %775 = vmatpush2.msra.mxu0 0.0
    %776 = vmatprep.subr.mxu0 0.0
    %777 = vmatpush2.msra.mxu0 0.0
    %778 = vmatprep.subr.mxu0 0.0
    %779 = vmatpush2.msra.mxu0 0.0
    %780 = vmatprep.subr.mxu0 0.0
    %781 = vmatpush2.msra.mxu0 0.0
    %782 = vmatprep.subr.mxu0 0.0
    %783 = vmatpush2.msra.mxu0 0.0
    %784 = vmatprep.subr.mxu0 0.0
    %785 = vmatpush2.msra.mxu0 0.0
    %786 = vmatprep.subr.mxu0 0.0
    %787 = vmatpush2.msra.mxu0 0.0
    %788 = vmatprep.subr.mxu0 0.0
    %789 = vmatpush2.msra.mxu0 0.0
    %790 = vmatprep.subr.mxu0 0.0
    %791 = vmatpush2.msra.mxu0 0.0
    %792 = vmatprep.subr.mxu0 0.0
    %793 = vmatpush2.msra.mxu0 0.0
    %794 = vmatprep.subr.mxu0 0.0
    %795 = vmatpush2.msra.mxu0 0.0
    %796 = vmatprep.mubr.f32.mxu0 0.0
    %v797 = vand.u32 %v594, 4294901760
    %798 = vmatmul.mubr.f32.gmra.mxu0 %v797
    %v799 = vpop.f32.mrf.mxu0
    %v800 = vadd.f32 %v679, %v799
    %v801 = vpop.f32.mrf.mxu0
    %802 = vmatprep.mubr.f32.mxu0 0.0
    %v803 = vand.u32 %v597, 4294901760
    %804 = vmatmul.mubr.f32.gmra.mxu0 %v803
    %v805 = vpop.f32.mrf.mxu0
    %v806 = vadd.f32 %v689, %v805
    %v807 = vpop.f32.mrf.mxu0
    %808 = vdwg.mxu0
    %809 = vmatprep.subr.mxu0 0.0
    %810 = vmatpush1.msra.mxu0 0.0
    %811 = vmatprep.subr.mxu0 0.0
    %812 = vmatpush1.msra.mxu0 0.0
    %813 = vmatprep.subr.mxu0 0.0
    %814 = vmatpush1.msra.mxu0 0.0
    %815 = vmatprep.subr.mxu0 0.0
    %816 = vmatpush1.msra.mxu0 0.0
    %817 = vmatprep.subr.mxu0 0.0
    %818 = vmatpush1.msra.mxu0 0.0
    %819 = vmatprep.subr.mxu0 0.0
    %820 = vmatpush1.msra.mxu0 0.0
    %821 = vmatprep.subr.mxu0 0.0
    %822 = vmatpush1.msra.mxu0 0.0
    %823 = vmatprep.subr.mxu0 0.0
    %824 = vmatpush1.msra.mxu0 0.0
    %825 = vmatprep.subr.mxu0 0.0
    %v826 = vand.u32 %v584, 4294901760
    %v827 = vsub.f32 %v584, %v826
    %828 = vmatpush1.msra.mxu0 %v827
    %829 = vmatprep.subr.mxu0 0.0
    %v830 = vand.u32 %v583, 4294901760
    %v831 = vsub.f32 %v583, %v830
    %832 = vmatpush1.msra.mxu0 %v831
    %833 = vmatprep.subr.mxu0 0.0
    %v834 = vand.u32 %v582, 4294901760
    %v835 = vsub.f32 %v582, %v834
    %836 = vmatpush1.msra.mxu0 %v835
    %837 = vmatprep.subr.mxu0 0.0
    %v838 = vand.u32 %v581, 4294901760
    %v839 = vsub.f32 %v581, %v838
    %840 = vmatpush1.msra.mxu0 %v839
    %841 = vmatprep.subr.mxu0 0.0
    %v842 = vand.u32 %v580, 4294901760
    %v843 = vsub.f32 %v580, %v842
    %844 = vmatpush1.msra.mxu0 %v843
    %845 = vmatprep.subr.mxu0 0.0
    %v846 = vand.u32 %v579, 4294901760
    %v847 = vsub.f32 %v579, %v846
    %848 = vmatpush1.msra.mxu0 %v847
    %849 = vmatprep.subr.mxu0 0.0
    %v850 = vand.u32 %v578, 4294901760
    %v851 = vsub.f32 %v578, %v850
    %852 = vmatpush1.msra.mxu0 %v851
    %853 = vmatprep.subr.mxu0 0.0
    %v854 = vand.u32 %v577, 4294901760
    %v855 = vsub.f32 %v577, %v854
    %856 = vmatpush1.msra.mxu0 %v855
    %857 = vmatprep.subr.mxu0 0.0
    %858 = vmatpush2.msra.mxu0 0.0
    %859 = vmatprep.subr.mxu0 0.0
    %860 = vmatpush2.msra.mxu0 0.0
    %861 = vmatprep.subr.mxu0 0.0
    %862 = vmatpush2.msra.mxu0 0.0
    %863 = vmatprep.subr.mxu0 0.0
    %864 = vmatpush2.msra.mxu0 0.0
    %865 = vmatprep.subr.mxu0 0.0
    %866 = vmatpush2.msra.mxu0 0.0
    %867 = vmatprep.subr.mxu0 0.0
    %868 = vmatpush2.msra.mxu0 0.0
    %869 = vmatprep.subr.mxu0 0.0
    %870 = vmatpush2.msra.mxu0 0.0
    %871 = vmatprep.subr.mxu0 0.0
    %872 = vmatpush2.msra.mxu0 0.0
    %873 = vmatprep.subr.mxu0 0.0
    %874 = vmatpush2.msra.mxu0 0.0
    %875 = vmatprep.subr.mxu0 0.0
    %876 = vmatpush2.msra.mxu0 0.0
    %877 = vmatprep.subr.mxu0 0.0
    %878 = vmatpush2.msra.mxu0 0.0
    %879 = vmatprep.subr.mxu0 0.0
    %880 = vmatpush2.msra.mxu0 0.0
    %881 = vmatprep.subr.mxu0 0.0
    %882 = vmatpush2.msra.mxu0 0.0
    %883 = vmatprep.subr.mxu0 0.0
    %884 = vmatpush2.msra.mxu0 0.0
    %885 = vmatprep.subr.mxu0 0.0
    %886 = vmatpush2.msra.mxu0 0.0
    %887 = vmatprep.subr.mxu0 0.0
    %888 = vmatpush2.msra.mxu0 0.0
    %889 = vmatprep.mubr.f32.mxu0 0.0
    %v890 = vand.u32 %v594, 4294901760
    %v891 = vsub.f32 %v594, %v890
    %892 = vmatmul.mubr.f32.gmra.mxu0 %v891
    %v893 = vpop.f32.mrf.mxu0
    %v894 = vadd.f32 %v800, %v893
    %v895 = vpop.f32.mrf.mxu0
    %896 = vmatprep.mubr.f32.mxu0 0.0
    %v897 = vand.u32 %v597, 4294901760
    %v898 = vsub.f32 %v597, %v897
    %899 = vmatmul.mubr.f32.gmra.mxu0 %v898
    %v900 = vpop.f32.mrf.mxu0
    %v901 = vadd.f32 %v806, %v900
    %v902 = vpop.f32.mrf.mxu0
    %903 = vdwg.mxu0
    %904 = vmatprep.subr.mxu0 0.0
    %905 = vmatpush1.msra.mxu0 0.0
    %906 = vmatprep.subr.mxu0 0.0
    %907 = vmatpush1.msra.mxu0 0.0
    %908 = vmatprep.subr.mxu0 0.0
    %909 = vmatpush1.msra.mxu0 0.0
    %910 = vmatprep.subr.mxu0 0.0
    %911 = vmatpush1.msra.mxu0 0.0
    %912 = vmatprep.subr.mxu0 0.0
    %913 = vmatpush1.msra.mxu0 0.0
    %914 = vmatprep.subr.mxu0 0.0
    %915 = vmatpush1.msra.mxu0 0.0
    %916 = vmatprep.subr.mxu0 0.0
    %917 = vmatpush1.msra.mxu0 0.0
    %918 = vmatprep.subr.mxu0 0.0
    %919 = vmatpush1.msra.mxu0 0.0
    %920 = vmatprep.subr.mxu0 0.0
    %v921 = vand.u32 %v584, 4294901760
    %922 = vmatpush1.msra.mxu0 %v921
    %923 = vmatprep.subr.mxu0 0.0
    %v924 = vand.u32 %v583, 4294901760
    %925 = vmatpush1.msra.mxu0 %v924
    %926 = vmatprep.subr.mxu0 0.0
    %v927 = vand.u32 %v582, 4294901760
    %928 = vmatpush1.msra.mxu0 %v927
    %929 = vmatprep.subr.mxu0 0.0
    %v930 = vand.u32 %v581, 4294901760
    %931 = vmatpush1.msra.mxu0 %v930
    %932 = vmatprep.subr.mxu0 0.0
    %v933 = vand.u32 %v580, 4294901760
    %934 = vmatpush1.msra.mxu0 %v933
    %935 = vmatprep.subr.mxu0 0.0
    %v936 = vand.u32 %v579, 4294901760
    %937 = vmatpush1.msra.mxu0 %v936
    %938 = vmatprep.subr.mxu0 0.0
    %v939 = vand.u32 %v578, 4294901760
    %940 = vmatpush1.msra.mxu0 %v939
    %941 = vmatprep.subr.mxu0 0.0
    %v942 = vand.u32 %v577, 4294901760
    %943 = vmatpush1.msra.mxu0 %v942
    %944 = vmatprep.subr.mxu0 0.0
    %945 = vmatpush2.msra.mxu0 0.0
    %946 = vmatprep.subr.mxu0 0.0
    %947 = vmatpush2.msra.mxu0 0.0
    %948 = vmatprep.subr.mxu0 0.0
    %949 = vmatpush2.msra.mxu0 0.0
    %950 = vmatprep.subr.mxu0 0.0
    %951 = vmatpush2.msra.mxu0 0.0
    %952 = vmatprep.subr.mxu0 0.0
    %953 = vmatpush2.msra.mxu0 0.0
    %954 = vmatprep.subr.mxu0 0.0
    %955 = vmatpush2.msra.mxu0 0.0
    %956 = vmatprep.subr.mxu0 0.0
    %957 = vmatpush2.msra.mxu0 0.0
    %958 = vmatprep.subr.mxu0 0.0
    %959 = vmatpush2.msra.mxu0 0.0
    %960 = vmatprep.subr.mxu0 0.0
    %961 = vmatpush2.msra.mxu0 0.0
    %962 = vmatprep.subr.mxu0 0.0
    %963 = vmatpush2.msra.mxu0 0.0
    %964 = vmatprep.subr.mxu0 0.0
    %965 = vmatpush2.msra.mxu0 0.0
    %966 = vmatprep.subr.mxu0 0.0
    %967 = vmatpush2.msra.mxu0 0.0
    %968 = vmatprep.subr.mxu0 0.0
    %969 = vmatpush2.msra.mxu0 0.0
    %970 = vmatprep.subr.mxu0 0.0
    %971 = vmatpush2.msra.mxu0 0.0
    %972 = vmatprep.subr.mxu0 0.0
    %973 = vmatpush2.msra.mxu0 0.0
    %974 = vmatprep.subr.mxu0 0.0
    %975 = vmatpush2.msra.mxu0 0.0
    %976 = vmatprep.mubr.f32.mxu0 0.0
    %v977 = vand.u32 %v594, 4294901760
    %v978 = vsub.f32 %v594, %v977
    %v979 = vand.u32 %v978, 4294901760
    %980 = vmatmul.mubr.f32.gmra.mxu0 %v979
    %v981 = vpop.f32.mrf.mxu0
    %v982 = vadd.f32 %v894, %v981
    %v983 = vpop.f32.mrf.mxu0
    %984 = vmatprep.mubr.f32.mxu0 0.0
    %v985 = vand.u32 %v597, 4294901760
    %v986 = vsub.f32 %v597, %v985
    %v987 = vand.u32 %v986, 4294901760
    %988 = vmatmul.mubr.f32.gmra.mxu0 %v987
    %v989 = vpop.f32.mrf.mxu0
    %v990 = vadd.f32 %v901, %v989
    %v991 = vpop.f32.mrf.mxu0
    %992 = vdwg.mxu0
    %993 = vmatprep.subr.mxu0 0.0
    %994 = vmatpush1.msra.mxu0 0.0
    %995 = vmatprep.subr.mxu0 0.0
    %996 = vmatpush1.msra.mxu0 0.0
    %997 = vmatprep.subr.mxu0 0.0
    %998 = vmatpush1.msra.mxu0 0.0
    %999 = vmatprep.subr.mxu0 0.0
    %1000 = vmatpush1.msra.mxu0 0.0
    %1001 = vmatprep.subr.mxu0 0.0
    %1002 = vmatpush1.msra.mxu0 0.0
    %1003 = vmatprep.subr.mxu0 0.0
    %1004 = vmatpush1.msra.mxu0 0.0
    %1005 = vmatprep.subr.mxu0 0.0
    %1006 = vmatpush1.msra.mxu0 0.0
    %1007 = vmatprep.subr.mxu0 0.0
    %1008 = vmatpush1.msra.mxu0 0.0
    %1009 = vmatprep.subr.mxu0 0.0
    %v1010 = vand.u32 %v584, 4294901760
    %v1011 = vsub.f32 %v584, %v1010
    %v1012 = vand.u32 %v1011, 4294901760
    %1013 = vmatpush1.msra.mxu0 %v1012
    %1014 = vmatprep.subr.mxu0 0.0
    %v1015 = vand.u32 %v583, 4294901760
    %v1016 = vsub.f32 %v583, %v1015
    %v1017 = vand.u32 %v1016, 4294901760
    %1018 = vmatpush1.msra.mxu0 %v1017
    %1019 = vmatprep.subr.mxu0 0.0
    %v1020 = vand.u32 %v582, 4294901760
    %v1021 = vsub.f32 %v582, %v1020
    %v1022 = vand.u32 %v1021, 4294901760
    %1023 = vmatpush1.msra.mxu0 %v1022
    %1024 = vmatprep.subr.mxu0 0.0
    %v1025 = vand.u32 %v581, 4294901760
    %v1026 = vsub.f32 %v581, %v1025
    %v1027 = vand.u32 %v1026, 4294901760
    %1028 = vmatpush1.msra.mxu0 %v1027
    %1029 = vmatprep.subr.mxu0 0.0
    %v1030 = vand.u32 %v580, 4294901760
    %v1031 = vsub.f32 %v580, %v1030
    %v1032 = vand.u32 %v1031, 4294901760
    %1033 = vmatpush1.msra.mxu0 %v1032
    %1034 = vmatprep.subr.mxu0 0.0
    %v1035 = vand.u32 %v579, 4294901760
    %v1036 = vsub.f32 %v579, %v1035
    %v1037 = vand.u32 %v1036, 4294901760
    %1038 = vmatpush1.msra.mxu0 %v1037
    %1039 = vmatprep.subr.mxu0 0.0
    %v1040 = vand.u32 %v578, 4294901760
    %v1041 = vsub.f32 %v578, %v1040
    %v1042 = vand.u32 %v1041, 4294901760
    %1043 = vmatpush1.msra.mxu0 %v1042
    %1044 = vmatprep.subr.mxu0 0.0
    %v1045 = vand.u32 %v577, 4294901760
    %v1046 = vsub.f32 %v577, %v1045
    %v1047 = vand.u32 %v1046, 4294901760
    %1048 = vmatpush1.msra.mxu0 %v1047
    %1049 = vmatprep.subr.mxu0 0.0
    %1050 = vmatpush2.msra.mxu0 0.0
    %1051 = vmatprep.subr.mxu0 0.0
    %1052 = vmatpush2.msra.mxu0 0.0
    %1053 = vmatprep.subr.mxu0 0.0
    %1054 = vmatpush2.msra.mxu0 0.0
    %1055 = vmatprep.subr.mxu0 0.0
    %1056 = vmatpush2.msra.mxu0 0.0
    %1057 = vmatprep.subr.mxu0 0.0
    %1058 = vmatpush2.msra.mxu0 0.0
    %1059 = vmatprep.subr.mxu0 0.0
    %1060 = vmatpush2.msra.mxu0 0.0
    %1061 = vmatprep.subr.mxu0 0.0
    %1062 = vmatpush2.msra.mxu0 0.0
    %1063 = vmatprep.subr.mxu0 0.0
    %1064 = vmatpush2.msra.mxu0 0.0
    %1065 = vmatprep.subr.mxu0 0.0
    %1066 = vmatpush2.msra.mxu0 0.0
    %1067 = vmatprep.subr.mxu0 0.0
    %1068 = vmatpush2.msra.mxu0 0.0
    %1069 = vmatprep.subr.mxu0 0.0
    %1070 = vmatpush2.msra.mxu0 0.0
    %1071 = vmatprep.subr.mxu0 0.0
    %1072 = vmatpush2.msra.mxu0 0.0
    %1073 = vmatprep.subr.mxu0 0.0
    %1074 = vmatpush2.msra.mxu0 0.0
    %1075 = vmatprep.subr.mxu0 0.0
    %1076 = vmatpush2.msra.mxu0 0.0
    %1077 = vmatprep.subr.mxu0 0.0
    %1078 = vmatpush2.msra.mxu0 0.0
    %1079 = vmatprep.subr.mxu0 0.0
    %1080 = vmatpush2.msra.mxu0 0.0
    %1081 = vmatprep.mubr.f32.mxu0 0.0
    %v1082 = vand.u32 %v594, 4294901760
    %1083 = vmatmul.mubr.f32.gmra.mxu0 %v1082
    %v1084 = vpop.f32.mrf.mxu0
    %v1085 = vadd.f32 %v982, %v1084
    %v1086 = vpop.f32.mrf.mxu0
    %1087 = vmatprep.mubr.f32.mxu0 0.0
    %v1088 = vand.u32 %v597, 4294901760
    %1089 = vmatmul.mubr.f32.gmra.mxu0 %v1088
    %v1090 = vpop.f32.mrf.mxu0
    %v1091 = vadd.f32 %v990, %v1090
    %v1092 = vpop.f32.mrf.mxu0
    %1093 = vdwg.mxu0
    %1094 = vmatprep.subr.mxu0 0.0
    %1095 = vmatpush1.msra.mxu0 0.0
    %1096 = vmatprep.subr.mxu0 0.0
    %1097 = vmatpush1.msra.mxu0 0.0
    %1098 = vmatprep.subr.mxu0 0.0
    %1099 = vmatpush1.msra.mxu0 0.0
    %1100 = vmatprep.subr.mxu0 0.0
    %1101 = vmatpush1.msra.mxu0 0.0
    %1102 = vmatprep.subr.mxu0 0.0
    %1103 = vmatpush1.msra.mxu0 0.0
    %1104 = vmatprep.subr.mxu0 0.0
    %1105 = vmatpush1.msra.mxu0 0.0
    %1106 = vmatprep.subr.mxu0 0.0
    %1107 = vmatpush1.msra.mxu0 0.0
    %1108 = vmatprep.subr.mxu0 0.0
    %1109 = vmatpush1.msra.mxu0 0.0
    %1110 = vmatprep.subr.mxu0 0.0
    %v1111 = vand.u32 %v584, 4294901760
    %1112 = vmatpush1.msra.mxu0 %v1111
    %1113 = vmatprep.subr.mxu0 0.0
    %v1114 = vand.u32 %v583, 4294901760
    %1115 = vmatpush1.msra.mxu0 %v1114
    %1116 = vmatprep.subr.mxu0 0.0
    %v1117 = vand.u32 %v582, 4294901760
    %1118 = vmatpush1.msra.mxu0 %v1117
    %1119 = vmatprep.subr.mxu0 0.0
    %v1120 = vand.u32 %v581, 4294901760
    %1121 = vmatpush1.msra.mxu0 %v1120
    %1122 = vmatprep.subr.mxu0 0.0
    %v1123 = vand.u32 %v580, 4294901760
    %1124 = vmatpush1.msra.mxu0 %v1123
    %1125 = vmatprep.subr.mxu0 0.0
    %v1126 = vand.u32 %v579, 4294901760
    %1127 = vmatpush1.msra.mxu0 %v1126
    %1128 = vmatprep.subr.mxu0 0.0
    %v1129 = vand.u32 %v578, 4294901760
    %1130 = vmatpush1.msra.mxu0 %v1129
    %1131 = vmatprep.subr.mxu0 0.0
    %v1132 = vand.u32 %v577, 4294901760
    %1133 = vmatpush1.msra.mxu0 %v1132
    %1134 = vmatprep.subr.mxu0 0.0
    %1135 = vmatpush2.msra.mxu0 0.0
    %1136 = vmatprep.subr.mxu0 0.0
    %1137 = vmatpush2.msra.mxu0 0.0
    %1138 = vmatprep.subr.mxu0 0.0
    %1139 = vmatpush2.msra.mxu0 0.0
    %1140 = vmatprep.subr.mxu0 0.0
    %1141 = vmatpush2.msra.mxu0 0.0
    %1142 = vmatprep.subr.mxu0 0.0
    %1143 = vmatpush2.msra.mxu0 0.0
    %1144 = vmatprep.subr.mxu0 0.0
    %1145 = vmatpush2.msra.mxu0 0.0
    %1146 = vmatprep.subr.mxu0 0.0
    %1147 = vmatpush2.msra.mxu0 0.0
    %1148 = vmatprep.subr.mxu0 0.0
    %1149 = vmatpush2.msra.mxu0 0.0
    %1150 = vmatprep.subr.mxu0 0.0
    %1151 = vmatpush2.msra.mxu0 0.0
    %1152 = vmatprep.subr.mxu0 0.0
    %1153 = vmatpush2.msra.mxu0 0.0
    %1154 = vmatprep.subr.mxu0 0.0
    %1155 = vmatpush2.msra.mxu0 0.0
    %1156 = vmatprep.subr.mxu0 0.0
    %1157 = vmatpush2.msra.mxu0 0.0
    %1158 = vmatprep.subr.mxu0 0.0
    %1159 = vmatpush2.msra.mxu0 0.0
    %1160 = vmatprep.subr.mxu0 0.0
    %1161 = vmatpush2.msra.mxu0 0.0
    %1162 = vmatprep.subr.mxu0 0.0
    %1163 = vmatpush2.msra.mxu0 0.0
    %1164 = vmatprep.subr.mxu0 0.0
    %1165 = vmatpush2.msra.mxu0 0.0
    %1166 = vmatprep.mubr.f32.mxu0 0.0
    %v1167 = vand.u32 %v594, 4294901760
    %1168 = vmatmul.mubr.f32.gmra.mxu0 %v1167
    %v1169 = vpop.f32.mrf.mxu0
    %v1170 = vadd.f32 %v1085, %v1169
    %v1171 = vpop.f32.mrf.mxu0
    %1172 = vmatprep.mubr.f32.mxu0 0.0
    %v1173 = vand.u32 %v597, 4294901760
    %1174 = vmatmul.mubr.f32.gmra.mxu0 %v1173
    %v1175 = vpop.f32.mrf.mxu0
    %v1176 = vadd.f32 %v1091, %v1175
    %v1177 = vpop.f32.mrf.mxu0
    %1178 = vdwg.mxu0
    %v1179 = vadd.f32 %v1170, %v27
    %v1180 = vadd.f32 %v1176, %v28
    %v1181 = vsel %vm40, %v1179, 0.0
    %1182 = vadd.xlane.f32.xlu0 %v1181
    %v1183 = vpop.xlane.xlu0 %1182
    %v1184 = vsel %vm40, %v1180, 0.0
    %1185 = vadd.xlane.f32.xlu0 %v1184
    %v1186 = vpop.xlane.xlu0 %1185
    %v1187 = vrcp.pop 32.0
    %v1188 = vmul.f32 %v1183, %v1187
    %v1189 = vmul.f32 %v1186, %v1187
    %v1190 = vsub.f32 %v1179, %v1188
    %v1191 = vsub.f32 %v1180, %v1189
    %v1192 = vmul.f32 %v1190, %v1190
    %v1193 = vmul.f32 %v1191, %v1191
    %v1194 = vsel %vm40, %v1192, 0.0
    %1195 = vadd.xlane.f32.xlu0 %v1194
    %v1196 = vpop.xlane.xlu0 %1195
    %v1197 = vsel %vm40, %v1193, 0.0
    %1198 = vadd.xlane.f32.xlu0 %v1197
    %v1199 = vpop.xlane.xlu0 %1198
    %v1200 = vmul.f32 %v1196, 0.032258064
    %v1201 = vmul.f32 %v1199, 0.032258064
    %v1202 = vrsqrt.pop %v1200
    %v1203 = vmul.f32 %v1200, %v1202
    %vm1204 = vcmp.eq.f32.partialorder %v1200, inf
    %v1205 = vsel %vm1204, %v1200, %v1203
    %vm1206 = vcmp.eq.f32.partialorder %v1200, 0.0
    %v1207 = vand.u32 %v1200, 2147483648
    %v1208 = vsel %vm1206, %v1207, %v1205
    %v1209 = vrsqrt.pop %v1201
    %v1210 = vmul.f32 %v1201, %v1209
    %vm1211 = vcmp.eq.f32.partialorder %v1201, inf
    %v1212 = vsel %vm1211, %v1201, %v1210
    %vm1213 = vcmp.eq.f32.partialorder %v1201, 0.0
    %v1214 = vand.u32 %v1201, 2147483648
    %v1215 = vsel %vm1213, %v1214, %v1212
    %v1216 = vadd.f32 %v1208, 1e-06
    %v1217 = vadd.f32 %v1215, 1e-06
    %v1218 = vrcp.pop %v1216
    %v1219 = vrcp.pop %v1217
    %v1220 = vld [vmem:[%s5] sm:$0x1]
    %v1221 = vmul.f32 %v1190, %v1218
    %v1222 = vmul.f32 %v1191, %v1219
    %v1224 = vlaneseq
    %v1225 = vshrl.u32 %v1224, 7
    %v1226 = vsub.s32 0, %v1225
    %v1227 = vrot.slane %v1220, %v1226
    %v1229 = vmul.f32 %v1227, %v1221
    %v1230 = vmul.f32 %v1227, %v1222
    %v1231 = vld [vmem:[%s6] sm:$0x1]
    %v1233 = vlaneseq
    %v1234 = vshrl.u32 %v1233, 7
    %v1235 = vsub.s32 0, %v1234
    %v1236 = vrot.slane %v1231, %v1235
    %v1238 = vadd.f32 %v1229, %v1236
    %v1239 = vadd.f32 %v1230, %v1236
    %1240 = vst.msk [vmem:[#allocation2] sm:$0xff] %vm40, %v1238
    %1241 = vst.msk [vmem:[#allocation2 + $0x8] sm:$0xff] %vm40, %v1239
    // Predicated region
    $region30: #{tpu_custom_call.1} parent=1 // pred_check
      _
    $region31: #{tpu_custom_call.1} parent=1 // pred_check_branch
      %1243 = sbr.rel (0) target = $region33
    $region32: #{tpu_custom_call.1} parent=1 // pred_region
      %s1245 = ssub.s32 256, 256
      %1246 = vsyncadd [#allocation3], %s1245
      %s1247 = sshll.u32 [#allocation2], 4
      %s1248 = int_to_ptr.vmem [resolvable:$true] %s1247
      %1253 = dma.vmem_to_hbm [thread:$0]  %s1248, 256, %s7, [#allocation3], 128, 128, 8
    $region33: #{tpu_custom_call.1} parent=1 // pred_fallthru
      _
    // Predicated region
    $region34: #{tpu_custom_call.1} parent=1 // pred_check
      _
    $region35: #{tpu_custom_call.1} parent=1 // pred_check_branch
      %1255 = sbr.rel (0) target = $region37
    $region36: #{tpu_custom_call.1} parent=1 // pred_region
      %1256 = dma.done [#allocation3], 256
    $region37: #{tpu_custom_call.1} parent=1 // pred_fallthru
      _
    %1257 = vsyncpa [#allocation3], 1

</llo_original>
